<compile_context>
chip_gen: v6e
topology: v6e:2x2x1
jax: 0.10.0
libtpu: 0.0.40
codegen_flags: <defaults>
</compile_context>

<pallas_src>
import functools

import jax
import jax.numpy as jnp
from jax.experimental import pallas as pl
from jax.experimental.pallas import tpu as pltpu


def _round_up(x, m):
    return ((x + m - 1) // m) * m


def _cdiv(a, b):
    return -(-a // b)


def _device_has_bf16_eup():
    """True on TPU generations with a bf16 VPU/EUP path (v6e / v7x)."""
    try:
        kind = jax.devices()[0].device_kind.lower()
    except Exception:
        return False
    return not any(t in kind for t in ("v2", "v3", "v4", "v5"))


def _pick_batch_tile(B, block_batch):
    """Pick batch tile TB (multiple of 8) and padded batch B_pad.

    Goals (in order):
      * >= 2 grid steps whenever the batch allows it (v7x megacore sharding);
      * TB big enough to amortize ~0.35us/grid-step overhead;
      * TB dividing the 8-rounded batch when possible, so the wrapper never has
        to materialize a padded copy of obs (an extra HBM pass).
    """
    B8 = _round_up(max(B, 1), 8)
    if 16 <= B8 <= 2 * block_batch:
        target = _round_up(_cdiv(B8, 2), 8)          # ~two tiles
    else:
        target = min(block_batch, B8)
    target = max(8, min(target, block_batch, B8))

    tb = target
    for cand in range(target, 7, -8):                # prefer a divisor of B8
        if B8 % cand == 0:
            tb = cand
            break
    if tb < max(8, target // 4):                     # but not a tiny tile
        tb = target
    return tb, _round_up(B, tb)


def _mlp_mean_kernel(n_layers, tanh_in_bf16, *refs):
    """Computes mean = mean_net(obs) for one batch tile.

    refs layout:
      obs_ref,                              # [TB, ob_dim]  f32 (cast to bf16 here)
      (W_ref, b_ref) * (n_layers + 1),      # W bf16, b f32
      mean_out_ref                          # [TB, ac_dim]  f32
    Matmuls run bf16 x bf16 -> f32 on the MXU.
    """
    obs_ref = refs[0]
    layer_refs = refs[1:1 + 2 * (n_layers + 1)]
    out_ref = refs[-1]

    # f32 -> bf16 cast on the VPU inside the kernel (VALU slot has slack);
    # avoids a separate wrapper-side HBM pass over obs.
    h = obs_ref[...].astype(jnp.bfloat16)
    for li in range(n_layers):
        w = layer_refs[2 * li][...]           # bf16 [in, out]
        b = layer_refs[2 * li + 1][...]       # f32  [1, out]
        z = jnp.dot(h, w, preferred_element_type=jnp.float32) + b
        if tanh_in_bf16:
            # v6e/v7x: bf16 EUP path, halves tanh vreg traffic, no extra cast.
            h = jnp.tanh(z.astype(jnp.bfloat16))
        else:
            # v5e: no bf16 VPU/EUP -> tanh in f32, bf16 only for the next MXU pass.
            h = jnp.tanh(z).astype(jnp.bfloat16)

    w = layer_refs[2 * n_layers][...]
    b = layer_refs[2 * n_layers + 1][...]
    mean = jnp.dot(h, w, preferred_element_type=jnp.float32) + b
    out_ref[...] = mean.astype(out_ref.dtype)


def prepare_params(params):
    """One-time conversion of f32 (W [in,out], b) params to kernel-ready dtypes.

    Do this once per parameter update, NOT per forward call, so the hot path
    makes no HBM passes over the weight set outside the kernel.
    """
    prepared = []
    for w, b in params:
        prepared.append((jnp.asarray(w, jnp.bfloat16),
                         jnp.asarray(b, jnp.float32).reshape(1, -1)))
    return prepared


def mlp_policy_forward(obs, prepared_params, logstd, *, block_batch=1024,
                       tanh_in_bf16=None):
    """MLPPolicy forward pass (continuous case).

    obs:             [B, ob_dim] float32
    prepared_params: output of prepare_params() -- bf16 W, f32 b per layer
    logstd:          [ac_dim] float32
    Returns (mean [B, ac_dim] f32, std [B, ac_dim] f32).
    """
    B, ob_dim = obs.shape
    n_layers = len(prepared_params) - 1
    dims = [ob_dim] + [int(w.shape[1]) for (w, _) in prepared_params]
    ac_dim = dims[-1]
    if tanh_in_bf16 is None:
        tanh_in_bf16 = _device_has_bf16_eup()

    weight_bytes = sum(int(w.size) * w.dtype.itemsize + int(b.size) * b.dtype.itemsize
                       for (w, b) in prepared_params)

    TB, B_pad = _pick_batch_tile(B, block_batch)

    # VMEM budget per grid step:
    #   weights/biases: single-buffered (Buffered(1)) -> 1x
    #   obs/out tiles:  double-buffered by the pipeline -> 2x
    #   in-kernel intermediates (z f32, tanh f32, h bf16) ~ 3 * TB * max_dim * 4
    max_dim = max(dims)

    def vmem_estimate(tb):
        return (weight_bytes
                + 2 * tb * ob_dim * 4
                + 2 * tb * ac_dim * 4
                + 3 * tb * max_dim * 4
                + (4 << 20))                         # compiler headroom

    # Shrink the tile if a large `size` would blow v7x's 64 MiB physical VMEM.
    while TB > 8 and vmem_estimate(TB) > (48 << 20):
        TB = max(8, _round_up(TB // 2, 8))
    B_pad = _round_up(B, TB)

    obs_in = obs
    if B_pad != B:
        # Fallback only; _pick_batch_tile avoids this whenever TB can divide B.
        obs_in = jnp.pad(obs, ((0, B_pad - B), (0, 0)))

    kernel_inputs = [obs_in]
    in_specs = [pl.BlockSpec((TB, ob_dim), lambda i: (i, 0))]
    resident = pl.Buffered(1)   # constant block index -> no double buffering
    for w, b in prepared_params:
        kernel_inputs.append(w)
        kernel_inputs.append(b)
        in_specs.append(pl.BlockSpec(w.shape, lambda i: (0, 0), pipeline_mode=resident))
        in_specs.append(pl.BlockSpec(b.shape, lambda i: (0, 0), pipeline_mode=resident))

    out_specs = pl.BlockSpec((TB, ac_dim), lambda i: (i, 0))
    grid = (B_pad // TB,)

    # Honest advisory cost hint (true matmul widths, true byte traffic).
    flops = 2 * B_pad * sum(dims[i] * dims[i + 1] for i in range(len(dims) - 1))
    transcendentals = B_pad * sum(dims[1:-1])
    bytes_accessed = int(B_pad * ob_dim * 4 + weight_bytes + B_pad * ac_dim * 4)

    # Always set the limit (v5e default scoped limit is only 16 MiB); cap below
    # v7x's 64 MiB physical VMEM.
    vmem_limit = int(min(max(vmem_estimate(TB), 32 << 20), 56 << 20))

    kernel = functools.partial(_mlp_mean_kernel, n_layers, bool(tanh_in_bf16))

    mean_full = pl.pallas_call(
        kernel,
        out_shape=jax.ShapeDtypeStruct((B_pad, ac_dim), jnp.float32),
        grid=grid,
        in_specs=in_specs,
        out_specs=out_specs,
        compiler_params=pltpu.CompilerParams(
            dimension_semantics=("parallel",),
            vmem_limit_bytes=vmem_limit,
        ),
        cost_estimate=pl.CostEstimate(
            flops=int(flops),
            transcendentals=int(transcendentals),
            bytes_accessed=bytes_accessed,
        ),
    )(*kernel_inputs)

    mean = mean_full if B_pad == B else mean_full[:B]
    # std = exp(logstd), broadcast over batch (Normal(mean, std)); computed once
    # outside the kernel -- a single EUP op, no per-row HBM writeback.
    std = jnp.broadcast_to(jnp.exp(jnp.asarray(logstd, jnp.float32)), mean.shape)
    return mean, std


def init_params(key, ob_dim, ac_dim, n_layers, size):
    """Deterministic init matching PyTorch nn.Linear default (uniform +/- 1/sqrt(fan_in))."""
    dims = [ob_dim] + [size] * n_layers + [ac_dim]
    params = []
    for i in range(len(dims) - 1):
        key, kw, kb = jax.random.split(key, 3)
        bound = 1.0 / jnp.sqrt(jnp.float32(dims[i]))
        w = jax.random.uniform(kw, (dims[i], dims[i + 1]), jnp.float32, -bound, bound)
        b = jax.random.uniform(kb, (1, dims[i + 1]), jnp.float32, -bound, bound)
        params.append((w, b))
    logstd = jnp.zeros((ac_dim,), jnp.float32)  # nn.Parameter(torch.zeros(ac_dim))
    return params, logstd


def reference_forward(obs, params, logstd):
    h = obs
    for w, b in params[:-1]:
        h = jnp.tanh(h @ w + b)
    w, b = params[-1]
    mean = h @ w + b
    std = jnp.broadcast_to(jnp.exp(logstd), mean.shape)
    return mean, std


if __name__ == "__main__":
    # Small shapes consistent with the module's constructor arguments.
    B, ob_dim, ac_dim, n_layers, size = 8, 16, 4, 2, 32

    key = jax.random.PRNGKey(0)
    key, k_obs = jax.random.split(key)
    obs = jax.random.normal(k_obs, (B, ob_dim), jnp.float32)

    params, logstd = init_params(key, ob_dim, ac_dim, n_layers, size)
    prepared = prepare_params(params)   # hoisted out of the per-call path

    # bf16 MXU operands (and bf16 tanh on v6e/v7x) with f32 accumulation
    # -> loosened tolerance vs the f32 reference.
    ATOL, RTOL = 7.5e-2, 5e-2

    mean, std = mlp_policy_forward(obs, prepared, logstd)
    jax.block_until_ready((mean, std))
    ref_mean, ref_std = reference_forward(obs, params, logstd)
    assert jnp.allclose(mean, ref_mean, atol=ATOL, rtol=RTOL), "mean mismatch"
    assert jnp.allclose(std, ref_std, atol=1e-6, rtol=1e-6), "std mismatch"

    # Multi-tile grid with a divisor tile (no batch padding, no wrapper jnp.pad).
    B2 = 200
    key, k_obs2 = jax.random.split(key)
    obs2 = jax.random.normal(k_obs2, (B2, ob_dim), jnp.float32)
    mean2, std2 = mlp_policy_forward(obs2, prepared, logstd)
    jax.block_until_ready((mean2, std2))
    ref_mean2, ref_std2 = reference_forward(obs2, params, logstd)
    assert jnp.allclose(mean2, ref_mean2, atol=ATOL, rtol=RTOL), "mean mismatch (gridded)"
    assert jnp.allclose(std2, ref_std2, atol=1e-6, rtol=1e-6), "std mismatch (gridded)"

    # Ragged batch (not a multiple of 8): exercises the pad fallback + row slice.
    B3 = 13
    key, k_obs3 = jax.random.split(key)
    obs3 = jax.random.normal(k_obs3, (B3, ob_dim), jnp.float32)
    mean3, std3 = mlp_policy_forward(obs3, prepared, logstd)
    jax.block_until_ready((mean3, std3))
    ref_mean3, ref_std3 = reference_forward(obs3, params, logstd)
    assert jnp.allclose(mean3, ref_mean3, atol=ATOL, rtol=RTOL), "mean mismatch (ragged)"
    assert jnp.allclose(std3, ref_std3, atol=1e-6, rtol=1e-6), "std mismatch (ragged)"

    # TODO(synk): Normal(...).sample() / the discrete Categorical branch used by
    # get_action() is stochastic host-side distribution glue, not kernel work.
    print("KERNEL_OK")
</pallas_src>

<mosaic_0001>
module attributes {stable_mosaic.version = 11 : i64} {
  func.func @_mlp_mean_kernel(%arg0: i32, %arg1: memref<8x16xf32, #tpu.memory_space<vmem>>, %arg2: memref<16x32xbf16, #tpu.memory_space<vmem>>, %arg3: memref<1x32xf32, #tpu.memory_space<vmem>>, %arg4: memref<32x32xbf16, #tpu.memory_space<vmem>>, %arg5: memref<1x32xf32, #tpu.memory_space<vmem>>, %arg6: memref<32x4xbf16, #tpu.memory_space<vmem>>, %arg7: memref<1x4xf32, #tpu.memory_space<vmem>>, %arg8: memref<8x4xf32, #tpu.memory_space<vmem>>) attributes {dimension_semantics = [#tpu.dimension_semantics<parallel>], iteration_bounds = array<i64: 1>, scalar_prefetch = 0 : i64, scratch_operands = 0 : i64, tpu.core_type = #tpu.core_type<tc>, window_params = [{transform_indices = @transform_0, window_bounds = array<i64: 8, 16>}, {pipeline_mode = #tpu.pipeline_mode<synchronous>, transform_indices = @transform_1, window_bounds = array<i64: 16, 32>}, {pipeline_mode = #tpu.pipeline_mode<synchronous>, transform_indices = @transform_2, window_bounds = array<i64: 1, 32>}, {pipeline_mode = #tpu.pipeline_mode<synchronous>, transform_indices = @transform_3, window_bounds = array<i64: 32, 32>}, {pipeline_mode = #tpu.pipeline_mode<synchronous>, transform_indices = @transform_4, window_bounds = array<i64: 1, 32>}, {pipeline_mode = #tpu.pipeline_mode<synchronous>, transform_indices = @transform_5, window_bounds = array<i64: 32, 4>}, {pipeline_mode = #tpu.pipeline_mode<synchronous>, transform_indices = @transform_6, window_bounds = array<i64: 1, 4>}, {transform_indices = @transform_7, window_bounds = array<i64: 8, 4>}]} {
    %c0 = arith.constant 0 : index
    %c0_0 = arith.constant 0 : index
    %0 = vector.load %arg1[%c0, %c0_0] : memref<8x16xf32, #tpu.memory_space<vmem>>, vector<8x16xf32>
    %1 = arith.truncf %0 : vector<8x16xf32> to vector<8x16xbf16>
    %c0_1 = arith.constant 0 : index
    %c0_2 = arith.constant 0 : index
    %2 = vector.load %arg2[%c0_1, %c0_2] : memref<16x32xbf16, #tpu.memory_space<vmem>>, vector<16x32xbf16>
    %c0_3 = arith.constant 0 : index
    %c0_4 = arith.constant 0 : index
    %3 = vector.load %arg3[%c0_3, %c0_4] : memref<1x32xf32, #tpu.memory_space<vmem>>, vector<1x32xf32>
    %cst = arith.constant dense<0.000000e+00> : vector<8x32xf32>
    %4 = tpu.matmul %1, %2, %cst {dimension_numbers = #tpu.dot_dimension_numbers<[1], [0], [0], [1], [0, 0, 1, 1], [], []>} : vector<8x16xbf16>, vector<16x32xbf16>, vector<8x32xf32> -> vector<8x32xf32>
    %5 = vector.broadcast %3 : vector<1x32xf32> to vector<8x32xf32>
    %6 = arith.addf %4, %5 : vector<8x32xf32>
    %7 = arith.truncf %6 : vector<8x32xf32> to vector<8x32xbf16>
    %8 = math.tanh %7 : vector<8x32xbf16>
    %c0_5 = arith.constant 0 : index
    %c0_6 = arith.constant 0 : index
    %9 = vector.load %arg4[%c0_5, %c0_6] : memref<32x32xbf16, #tpu.memory_space<vmem>>, vector<32x32xbf16>
    %c0_7 = arith.constant 0 : index
    %c0_8 = arith.constant 0 : index
    %10 = vector.load %arg5[%c0_7, %c0_8] : memref<1x32xf32, #tpu.memory_space<vmem>>, vector<1x32xf32>
    %cst_9 = arith.constant dense<0.000000e+00> : vector<8x32xf32>
    %11 = tpu.matmul %8, %9, %cst_9 {dimension_numbers = #tpu.dot_dimension_numbers<[1], [0], [0], [1], [0, 0, 1, 1], [], []>} : vector<8x32xbf16>, vector<32x32xbf16>, vector<8x32xf32> -> vector<8x32xf32>
    %12 = vector.broadcast %10 : vector<1x32xf32> to vector<8x32xf32>
    %13 = arith.addf %11, %12 : vector<8x32xf32>
    %14 = arith.truncf %13 : vector<8x32xf32> to vector<8x32xbf16>
    %15 = math.tanh %14 : vector<8x32xbf16>
    %c0_10 = arith.constant 0 : index
    %c0_11 = arith.constant 0 : index
    %16 = vector.load %arg6[%c0_10, %c0_11] : memref<32x4xbf16, #tpu.memory_space<vmem>>, vector<32x4xbf16>
    %c0_12 = arith.constant 0 : index
    %c0_13 = arith.constant 0 : index
    %17 = vector.load %arg7[%c0_12, %c0_13] : memref<1x4xf32, #tpu.memory_space<vmem>>, vector<1x4xf32>
    %cst_14 = arith.constant dense<0.000000e+00> : vector<8x4xf32>
    %18 = tpu.matmul %15, %16, %cst_14 {dimension_numbers = #tpu.dot_dimension_numbers<[1], [0], [0], [1], [0, 0, 1, 1], [], []>} : vector<8x32xbf16>, vector<32x4xbf16>, vector<8x4xf32> -> vector<8x4xf32>
    %19 = vector.broadcast %17 : vector<1x4xf32> to vector<8x4xf32>
    %20 = arith.addf %18, %19 : vector<8x4xf32>
    %c0_15 = arith.constant 0 : index
    %c0_16 = arith.constant 0 : index
    %21 = vector.load %arg8[%c0_15, %c0_16] : memref<8x4xf32, #tpu.memory_space<vmem>>, vector<8x4xf32>
    tpu.vector_store %arg8[%c0_15, %c0_16], %20 {strides = array<i32>} : memref<8x4xf32, #tpu.memory_space<vmem>>, vector<8x4xf32>,
    return
  }
  func.func @transform_0(%arg0: i32) -> (i32, i32) {
    %c0_i32 = arith.constant 0 : i32
    %c0_i32_0 = arith.constant 0 : i32
    return %arg0, %c0_i32 : i32, i32
  }
  func.func @transform_1(%arg0: i32) -> (i32, i32) {
    %c0_i32 = arith.constant 0 : i32
    %c0_i32_0 = arith.constant 0 : i32
    %c0_i32_1 = arith.constant 0 : i32
    return %c0_i32, %c0_i32_0 : i32, i32
  }
  func.func @transform_2(%arg0: i32) -> (i32, i32) {
    %c0_i32 = arith.constant 0 : i32
    %c0_i32_0 = arith.constant 0 : i32
    %c0_i32_1 = arith.constant 0 : i32
    return %c0_i32, %c0_i32_0 : i32, i32
  }
  func.func @transform_3(%arg0: i32) -> (i32, i32) {
    %c0_i32 = arith.constant 0 : i32
    %c0_i32_0 = arith.constant 0 : i32
    %c0_i32_1 = arith.constant 0 : i32
    return %c0_i32, %c0_i32_0 : i32, i32
  }
  func.func @transform_4(%arg0: i32) -> (i32, i32) {
    %c0_i32 = arith.constant 0 : i32
    %c0_i32_0 = arith.constant 0 : i32
    %c0_i32_1 = arith.constant 0 : i32
    return %c0_i32, %c0_i32_0 : i32, i32
  }
  func.func @transform_5(%arg0: i32) -> (i32, i32) {
    %c0_i32 = arith.constant 0 : i32
    %c0_i32_0 = arith.constant 0 : i32
    %c0_i32_1 = arith.constant 0 : i32
    return %c0_i32, %c0_i32_0 : i32, i32
  }
  func.func @transform_6(%arg0: i32) -> (i32, i32) {
    %c0_i32 = arith.constant 0 : i32
    %c0_i32_0 = arith.constant 0 : i32
    %c0_i32_1 = arith.constant 0 : i32
    return %c0_i32, %c0_i32_0 : i32, i32
  }
  func.func @transform_7(%arg0: i32) -> (i32, i32) {
    %c0_i32 = arith.constant 0 : i32
    %c0_i32_0 = arith.constant 0 : i32
    return %arg0, %c0_i32 : i32, i32
  }
}

</mosaic_0001>

<llo_original>
// kernel: tpu_custom_call.1
$region0: #{tpu_custom_call.1}
  #allocation0 [shape = 'u32[]', space=smem, size = 0x4, offset = 0x4, fixed_abs, tag = 'smem constant byte address 0x4 - core index']
  #allocation1 [shape = 'u32[144,128]{1,0:T(1,128)}', space=vmem, size = 0x12000, scoped, tag = 'internal scratch']
  %s0 = inlined_call_operand.hbm [shape: f32[8,16], index: 0, kind: input, shape index: {}]
  %s1 = inlined_call_operand.hbm [shape: bf16[16,32], index: 1, kind: input, shape index: {}]
  %s2 = inlined_call_operand.vmem [shape: f32[1,32], index: 2, kind: input, shape index: {}]
  %s3 = inlined_call_operand.vmem [shape: bf16[32,32], index: 3, kind: input, shape index: {}]
  %s4 = inlined_call_operand.vmem [shape: f32[1,32], index: 4, kind: input, shape index: {}]
  %s5 = inlined_call_operand.vmem [shape: bf16[32,4], index: 5, kind: input, shape index: {}]
  %s6 = inlined_call_operand.vmem [shape: f32[1,4], index: 6, kind: input, shape index: {}]
  %s7 = inlined_call_operand.vmem [shape: f32[8,4], index: 7, kind: output, shape index: {}]
  %s8 = sld [smem:[#allocation0]]
  $region46: #{tpu_custom_call.1} parent=0
    _
  %s10 = ssub.s32 1, %s8
  %s11 = scalar_select 0, %s10, %s8
  $region1: #{tpu_custom_call.1} parent=0
    #allocation2 [shape = 'u8[4096]{0}', space=vmem, size = 0x1000, scoped, tag = 'input window, operand 0, single buffered']
    #allocation3 [shape = 's32[1]{0}', space=sflag, size = 0x4, scoped, tag = 'scoped memory for tpu_custom_call.1']
    #allocation4 [shape = 'u8[4096]{0}', space=vmem, size = 0x1000, scoped, tag = 'input window, operand 1, single buffered']
    #allocation5 [shape = 's32[1]{0}', space=sflag, size = 0x4, scoped, tag = 'scoped memory for tpu_custom_call.1']
    %12 = vsyncpa [#allocation3], 0
    %13 = vsyncpa [#allocation5], 0
    // Predicated region
    $region2: #{tpu_custom_call.1} parent=1 // pred_check
      _
    $region3: #{tpu_custom_call.1} parent=1 // pred_check_branch
      %15 = sbr.rel (0) target = $region5
    $region4: #{tpu_custom_call.1} parent=1 // pred_region
      %s17 = ssub.s32 128, 128
      %18 = vsyncadd [#allocation3], %s17
      %s20 = sshll.u32 [#allocation2], 4
      %s21 = int_to_ptr.vmem [resolvable:$true] %s20
      %23 = dma.hbm_to_vmem [thread:$0]  %s0, 128, %s21, [#allocation3]
    $region5: #{tpu_custom_call.1} parent=1 // pred_fallthru
      _
    // Predicated region
    $region6: #{tpu_custom_call.1} parent=1 // pred_check
      _
    $region7: #{tpu_custom_call.1} parent=1 // pred_check_branch
      %25 = sbr.rel (0) target = $region9
    $region8: #{tpu_custom_call.1} parent=1 // pred_region
      %s27 = ssub.s32 128, 128
      %28 = vsyncadd [#allocation5], %s27
      %s29 = sshll.u32 [#allocation4], 4
      %s30 = int_to_ptr.vmem [resolvable:$true] %s29
      %35 = dma.hbm_to_vmem [thread:$0]  %s1, 128, %s30, [#allocation5], 64, 64, 4
    $region9: #{tpu_custom_call.1} parent=1 // pred_fallthru
      _
    // Predicated region
    $region10: #{tpu_custom_call.1} parent=1 // pred_check
      _
    $region11: #{tpu_custom_call.1} parent=1 // pred_check_branch
      %37 = sbr.rel (0) target = $region13
    $region12: #{tpu_custom_call.1} parent=1 // pred_region
      _
    $region13: #{tpu_custom_call.1} parent=1 // pred_fallthru
      _
    // Predicated region
    $region14: #{tpu_custom_call.1} parent=1 // pred_check
      _
    $region15: #{tpu_custom_call.1} parent=1 // pred_check_branch
      %39 = sbr.rel (0) target = $region17
    $region16: #{tpu_custom_call.1} parent=1 // pred_region
      _
    $region17: #{tpu_custom_call.1} parent=1 // pred_fallthru
      _
    // Predicated region
    $region18: #{tpu_custom_call.1} parent=1 // pred_check
      _
    $region19: #{tpu_custom_call.1} parent=1 // pred_check_branch
      %41 = sbr.rel (0) target = $region21
    $region20: #{tpu_custom_call.1} parent=1 // pred_region
      _
    $region21: #{tpu_custom_call.1} parent=1 // pred_fallthru
      _
    // Predicated region
    $region22: #{tpu_custom_call.1} parent=1 // pred_check
      _
    $region23: #{tpu_custom_call.1} parent=1 // pred_check_branch
      %43 = sbr.rel (0) target = $region25
    $region24: #{tpu_custom_call.1} parent=1 // pred_region
      _
    $region25: #{tpu_custom_call.1} parent=1 // pred_fallthru
      _
    // Predicated region
    $region26: #{tpu_custom_call.1} parent=1 // pred_check
      _
    $region27: #{tpu_custom_call.1} parent=1 // pred_check_branch
      %45 = sbr.rel (0) target = $region29
    $region28: #{tpu_custom_call.1} parent=1 // pred_region
      _
    $region29: #{tpu_custom_call.1} parent=1 // pred_fallthru
      _
    // Predicated region
    $region30: #{tpu_custom_call.1} parent=1 // pred_check
      _
    $region31: #{tpu_custom_call.1} parent=1 // pred_check_branch
      %47 = sbr.rel (0) target = $region33
    $region32: #{tpu_custom_call.1} parent=1 // pred_region
      %48 = dma.done [#allocation3], 128
    $region33: #{tpu_custom_call.1} parent=1 // pred_fallthru
      _
    // Predicated region
    $region34: #{tpu_custom_call.1} parent=1 // pred_check
      _
    $region35: #{tpu_custom_call.1} parent=1 // pred_check_branch
      %50 = sbr.rel (0) target = $region37
    $region36: #{tpu_custom_call.1} parent=1 // pred_region
      %51 = dma.done [#allocation5], 128
    $region37: #{tpu_custom_call.1} parent=1 // pred_fallthru
      _
    %v53 = vld [vmem:[#allocation2] sm:$0xff]
    %v54 = vpack.c.bf16 %v53, %v53
    %v55 = vld [vmem:[#allocation4] sm:$0xf]
    %v56 = vld [vmem:[#allocation4 + $0x4] sm:$0xf]
    %v57 = vld [vmem:[%s2] sm:$0x1]
    %v59 = vlaneseq
    %v60 = vshrl.u32 %v59, 7
    %v61 = vsub.s32 0, %v60
    %v62 = vrot.slane %v57, %v61
    %v66 = vunpack.c.l.b16 %v55
    %v67 = vunpack.c.l.b16 %v56
    %v68 = vpack.c.b16 %v67, %v66
    %vm70 = vcmask 130048
    %v72 = vsel %vm70, %v54, 0
    %74 = vmatprep.subr.bf16.mxu0 0
    %75 = vmatpush1.bf16.msra.mxu0 0
    %76 = vmatprep.subr.bf16.mxu0 0
    %77 = vmatpush1.bf16.msra.mxu0 0
    %78 = vmatprep.subr.bf16.mxu0 0
    %79 = vmatpush1.bf16.msra.mxu0 0
    %80 = vmatprep.subr.bf16.mxu0 0
    %81 = vmatpush1.bf16.msra.mxu0 0
    %82 = vmatprep.subr.bf16.mxu0 0
    %83 = vmatpush1.bf16.msra.mxu0 0
    %84 = vmatprep.subr.bf16.mxu0 0
    %85 = vmatpush1.bf16.msra.mxu0 0
    %86 = vmatprep.subr.bf16.mxu0 0
    %87 = vmatpush1.bf16.msra.mxu0 0
    %88 = vmatprep.subr.bf16.mxu0 0
    %89 = vmatpush1.bf16.msra.mxu0 %v68
    %90 = vmatprep.subr.bf16.mxu0 0
    %91 = vmatpush2.bf16.msra.mxu0 0
    %92 = vmatprep.subr.bf16.mxu0 0
    %93 = vmatpush2.bf16.msra.mxu0 0
    %94 = vmatprep.subr.bf16.mxu0 0
    %95 = vmatpush2.bf16.msra.mxu0 0
    %96 = vmatprep.subr.bf16.mxu0 0
    %97 = vmatpush2.bf16.msra.mxu0 0
    %98 = vmatprep.subr.bf16.mxu0 0
    %99 = vmatpush2.bf16.msra.mxu0 0
    %100 = vmatprep.subr.bf16.mxu0 0
    %101 = vmatpush2.bf16.msra.mxu0 0
    %102 = vmatprep.subr.bf16.mxu0 0
    %103 = vmatpush2.bf16.msra.mxu0 0
    %104 = vmatprep.subr.bf16.mxu0 0
    %105 = vmatpush2.bf16.msra.mxu0 0
    %106 = vmatprep.mubr.bf16.mxu0 0
    %107 = vmatmul.mubr.bf16.gmra.mxu0 %v72
    %v108 = vpop.f32.mrf.mxu0
    %v109 = vadd.f32 %v62, %v108
    %v110 = vpop.f32.mrf.mxu0
    %v111 = vpop.f32.mrf.mxu0
    %v112 = vpop.f32.mrf.mxu0
    %113 = vdwg.mxu0
    %v114 = vpack.c.bf16 %v109, %v109
    %v115 = vtanh.bf16.pop %v114
    %v116 = vld [vmem:[%s3] sm:$0xf]
    %v117 = vld [vmem:[%s3 + $0x4] sm:$0xf]
    %v118 = vld [vmem:[%s3 + $0x8] sm:$0xf]
    %v119 = vld [vmem:[%s3 + $0xc] sm:$0xf]
    %v120 = vld [vmem:[%s4] sm:$0x1]
    %v122 = vlaneseq
    %v123 = vshrl.u32 %v122, 7
    %v124 = vsub.s32 0, %v123
    %v125 = vrot.slane %v120, %v124
    %v131 = vunpack.c.l.b16 %v116
    %v132 = vunpack.c.l.b16 %v117
    %v133 = vunpack.c.l.b16 %v118
    %v134 = vunpack.c.l.b16 %v119
    %v135 = vpack.c.b16 %v132, %v131
    %v136 = vpack.c.b16 %v134, %v133
    %vm139 = vcmask 261120
    %v141 = vsel %vm139, %v115, 0
    %143 = vmatprep.subr.bf16.mxu0 0
    %144 = vmatpush1.bf16.msra.mxu0 0
    %145 = vmatprep.subr.bf16.mxu0 0
    %146 = vmatpush1.bf16.msra.mxu0 0
    %147 = vmatprep.subr.bf16.mxu0 0
    %148 = vmatpush1.bf16.msra.mxu0 0
    %149 = vmatprep.subr.bf16.mxu0 0
    %150 = vmatpush1.bf16.msra.mxu0 0
    %151 = vmatprep.subr.bf16.mxu0 0
    %152 = vmatpush1.bf16.msra.mxu0 0
    %153 = vmatprep.subr.bf16.mxu0 0
    %154 = vmatpush1.bf16.msra.mxu0 0
    %155 = vmatprep.subr.bf16.mxu0 0
    %156 = vmatpush1.bf16.msra.mxu0 %v136
    %157 = vmatprep.subr.bf16.mxu0 0
    %158 = vmatpush1.bf16.msra.mxu0 %v135
    %159 = vmatprep.subr.bf16.mxu0 0
    %160 = vmatpush2.bf16.msra.mxu0 0
    %161 = vmatprep.subr.bf16.mxu0 0
    %162 = vmatpush2.bf16.msra.mxu0 0
    %163 = vmatprep.subr.bf16.mxu0 0
    %164 = vmatpush2.bf16.msra.mxu0 0
    %165 = vmatprep.subr.bf16.mxu0 0
    %166 = vmatpush2.bf16.msra.mxu0 0
    %167 = vmatprep.subr.bf16.mxu0 0
    %168 = vmatpush2.bf16.msra.mxu0 0
    %169 = vmatprep.subr.bf16.mxu0 0
    %170 = vmatpush2.bf16.msra.mxu0 0
    %171 = vmatprep.subr.bf16.mxu0 0
    %172 = vmatpush2.bf16.msra.mxu0 0
    %173 = vmatprep.subr.bf16.mxu0 0
    %174 = vmatpush2.bf16.msra.mxu0 0
    %175 = vmatprep.mubr.bf16.mxu0 0
    %176 = vmatmul.mubr.bf16.gmra.mxu0 %v141
    %v177 = vpop.f32.mrf.mxu0
    %v178 = vadd.f32 %v125, %v177
    %v179 = vpop.f32.mrf.mxu0
    %v180 = vpop.f32.mrf.mxu0
    %v181 = vpop.f32.mrf.mxu0
    %182 = vdwg.mxu0
    %v183 = vpack.c.bf16 %v178, %v178
    %v184 = vtanh.bf16.pop %v183
    %v185 = vld [vmem:[%s5] sm:$0xf]
    %v186 = vld [vmem:[%s5 + $0x4] sm:$0xf]
    %v187 = vld [vmem:[%s5 + $0x8] sm:$0xf]
    %v188 = vld [vmem:[%s5 + $0xc] sm:$0xf]
    %v189 = vld [vmem:[%s6] sm:$0x1]
    %v191 = vlaneseq
    %v192 = vshrl.u32 %v191, 7
    %v193 = vsub.s32 0, %v192
    %v194 = vrot.slane %v189, %v193
    %v200 = vunpack.c.l.b16 %v185
    %v201 = vunpack.c.l.b16 %v186
    %v202 = vunpack.c.l.b16 %v187
    %v203 = vunpack.c.l.b16 %v188
    %v204 = vpack.c.b16 %v201, %v200
    %v205 = vpack.c.b16 %v203, %v202
    %v209 = vsel %vm139, %v184, 0
    %211 = vmatprep.subr.bf16.mxu0 0
    %212 = vmatpush1.bf16.msra.mxu0 0
    %213 = vmatprep.subr.bf16.mxu0 0
    %214 = vmatpush1.bf16.msra.mxu0 0
    %215 = vmatprep.subr.bf16.mxu0 0
    %216 = vmatpush1.bf16.msra.mxu0 0
    %217 = vmatprep.subr.bf16.mxu0 0
    %218 = vmatpush1.bf16.msra.mxu0 0
    %219 = vmatprep.subr.bf16.mxu0 0
    %220 = vmatpush1.bf16.msra.mxu0 0
    %221 = vmatprep.subr.bf16.mxu0 0
    %222 = vmatpush1.bf16.msra.mxu0 0
    %223 = vmatprep.subr.bf16.mxu0 0
    %224 = vmatpush1.bf16.msra.mxu0 %v205
    %225 = vmatprep.subr.bf16.mxu0 0
    %226 = vmatpush1.bf16.msra.mxu0 %v204
    %227 = vmatprep.subr.bf16.mxu0 0
    %228 = vmatpush2.bf16.msra.mxu0 0
    %229 = vmatprep.subr.bf16.mxu0 0
    %230 = vmatpush2.bf16.msra.mxu0 0
    %231 = vmatprep.subr.bf16.mxu0 0
    %232 = vmatpush2.bf16.msra.mxu0 0
    %233 = vmatprep.subr.bf16.mxu0 0
    %234 = vmatpush2.bf16.msra.mxu0 0
    %235 = vmatprep.subr.bf16.mxu0 0
    %236 = vmatpush2.bf16.msra.mxu0 0
    %237 = vmatprep.subr.bf16.mxu0 0
    %238 = vmatpush2.bf16.msra.mxu0 0
    %239 = vmatprep.subr.bf16.mxu0 0
    %240 = vmatpush2.bf16.msra.mxu0 0
    %241 = vmatprep.subr.bf16.mxu0 0
    %242 = vmatpush2.bf16.msra.mxu0 0
    %243 = vmatprep.mubr.bf16.mxu0 0
    %244 = vmatmul.mubr.bf16.gmra.mxu0 %v209
    %v245 = vpop.f32.mrf.mxu0
    %v246 = vadd.f32 %v194, %v245
    %v247 = vpop.f32.mrf.mxu0
    %v248 = vpop.f32.mrf.mxu0
    %v249 = vpop.f32.mrf.mxu0
    %250 = vdwg.mxu0
    %vm251 = vcmask 31744
    %252 = vst.msk [vmem:[%s7] sm:$0xff] %vm251, %v246
    // Predicated region
    $region38: #{tpu_custom_call.1} parent=1 // pred_check
      _
    $region39: #{tpu_custom_call.1} parent=1 // pred_check_branch
      %254 = sbr.rel (0) target = $region41
    $region40: #{tpu_custom_call.1} parent=1 // pred_region
      _
    $region41: #{tpu_custom_call.1} parent=1 // pred_fallthru
      _
    // Predicated region
    $region42: #{tpu_custom_call.1} parent=1 // pred_check
      _
    $region43: #{tpu_custom_call.1} parent=1 // pred_check_branch
      %256 = sbr.rel (0) target = $region45
    $region44: #{tpu_custom_call.1} parent=1 // pred_region
      _
    $region45: #{tpu_custom_call.1} parent=1 // pred_fallthru
      _
    %257 = vsyncpa [#allocation3], 1
    %258 = vsyncpa [#allocation5], 1

</llo_original>
